<compile_context>
chip_gen: v6e
topology: v6e:2x2x1
jax: 0.10.0
libtpu: 0.0.40
codegen_flags: <defaults>
</compile_context>

<pallas_src>
import jax
import jax.numpy as jnp
import numpy as np
from jax.experimental import pallas as pl
from jax.experimental.pallas import tpu as pltpu


def _round_up(n, m):
    return ((n + m - 1) // m) * m


def _pick_bt(B, in_bytes_per_b, out_bytes_per_b):
    """Largest batch tile whose (double-buffered) blocks fit a conservative budget."""
    budget = 8 * 1024 * 1024           # safe inside v5e's 16 MiB scoped default
    cap = min(32, max(1, B // 2))      # keep >= 2 grid steps (v7x megacore) & bound unroll
    best = 1
    for cand in range(1, B + 1):
        if B % cand != 0 or cand > cap:
            continue
        if 2 * cand * (in_bytes_per_b + out_bytes_per_b) <= budget:
            best = cand
    return best


def _make_kernel(KH, KW, W, M_pad, bt, Cin, Cout):
    """Per-grid-step kernel; all shape parameters are static Python ints."""

    def kernel(x_ref, w_ref, b_ref, o_ref):
        # x_ref: (bt, Cin, HW_pad)     w_ref: (Cout, KH*KW*Cin)
        # b_ref: (Cout, 1)             o_ref: (bt, Cout, M_pad)
        x = x_ref[...]

        # Build the stacked RHS in VMEM from the 9 shifted slices:
        #   rows ordered (tap k = kh*KW + kw, cin c), columns ordered (batch b, m).
        cols = []
        for b in range(bt):                       # static unroll, bt is small
            parts = []
            for kh in range(KH):
                for kw in range(KW):
                    off = kh * W + kw             # static lane offset
                    parts.append(x[b, :, off:off + M_pad])     # (Cin, M_pad)
            cols.append(jnp.concatenate(parts, axis=0))         # (KH*KW*Cin, M_pad)
        rhs = cols[0] if bt == 1 else jnp.concatenate(cols, axis=1)

        # Single MXU matmul for all taps and all bt batch elements (K = 9*Cin).
        acc = jnp.dot(w_ref[...], rhs, preferred_element_type=jnp.float32)
        acc = acc + b_ref[...].astype(jnp.float32)               # (Cout, bt*M_pad)

        # Lane-aligned, full-width stores (M_pad is a multiple of 128).
        for b in range(bt):
            o_ref[b] = acc[:, b * M_pad:(b + 1) * M_pad].astype(o_ref.dtype)

    return kernel


def concat_conv2d(t, x_nchw, weight, bias, *, ksize=3):
    """ConcatConv2d forward.

    x_nchw: (B, Cin, H, W); weight: (Cout, Cin+1, K, K); bias: (Cout,)
    Returns NCHW output (B, Cout, H-K+1, W-K+1).
    """
    B, Cin, H, W = x_nchw.shape
    Cout, Cin1, KH, KW = weight.shape
    assert Cin1 == Cin + 1 and KH == ksize and KW == ksize
    Ho, Wo = H - KH + 1, W - KW + 1          # stride=1, padding=0, dilation=1

    # ---- fold the constant t channel into the bias (exact for VALID padding) --
    t = jnp.asarray(t, dtype=weight.dtype)
    bias_eff = bias + t * jnp.sum(weight[:, 0, :, :], axis=(1, 2))       # (Cout,)

    # ---- tiny parameter repack: (Cout, Cin, KH, KW) -> (Cout, KH*KW*Cin) ------
    # contraction index order (k = kh*KW + kw, c) must match the kernel's RHS.
    K2 = KH * KW
    w_flat = jnp.transpose(weight[:, 1:, :, :], (0, 2, 3, 1)).reshape(Cout, K2 * Cin)
    b2 = bias_eff.reshape(Cout, 1).astype(jnp.float32)

    # ---- lane-dense geometry ---------------------------------------------------
    M_pad = _round_up(Ho * W, 128)           # output span per batch element (>= Ho*W)
    max_off = (KH - 1) * W + (KW - 1)        # largest tap offset
    HW_pad = _round_up(max_off + M_pad, 128) # every shifted slice stays in-bounds
    x_flat = x_nchw.reshape(B, Cin, H * W)   # contiguous reshape
    x_pad = jnp.pad(x_flat, ((0, 0), (0, 0), (0, HW_pad - H * W)))

    itemsize = x_pad.dtype.itemsize
    bt = _pick_bt(B, Cin * HW_pad * itemsize, Cout * M_pad * itemsize)

    kernel = _make_kernel(KH, KW, W, M_pad, bt, Cin, Cout)
    flops = 2 * B * Cout * K2 * Cin * M_pad
    bytes_accessed = (B * Cin * HW_pad + Cout * K2 * Cin + Cout
                      + B * Cout * M_pad) * itemsize

    out = pl.pallas_call(
        kernel,
        out_shape=jax.ShapeDtypeStruct((B, Cout, M_pad), x_nchw.dtype),
        grid=(B // bt,),
        in_specs=[
            pl.BlockSpec((bt, Cin, HW_pad), lambda i: (i, 0, 0)),
            pl.BlockSpec((Cout, K2 * Cin), lambda i: (0, 0)),
            pl.BlockSpec((Cout, 1), lambda i: (0, 0)),
        ],
        out_specs=pl.BlockSpec((bt, Cout, M_pad), lambda i: (i, 0, 0)),
        compiler_params=pltpu.CompilerParams(
            dimension_semantics=("parallel",),
            vmem_limit_bytes=32 * 1024 * 1024),
        cost_estimate=pl.CostEstimate(
            flops=flops, transcendentals=0, bytes_accessed=bytes_accessed),
    )(x_pad, w_flat, b2)

    # Valid flattened positions are [0, Ho*W); the (W - Wo) wrap-around columns
    # per row are removed by the final :Wo slice.  Output is already NCHW.
    return out[:, :, :Ho * W].reshape(B, Cout, Ho, W)[:, :, :, :Wo]


if __name__ == "__main__":
    # Small shapes consistent with the module: dim_in=4, dim_out=8, ksize=3.
    B, Cin, H, W = 2, 4, 16, 16
    Cout, K = 8, 3

    key = jax.random.PRNGKey(0)
    k_x, k_w, k_b = jax.random.split(key, 3)

    x = jax.random.normal(k_x, (B, Cin, H, W), dtype=jnp.float32)
    fan_in = (Cin + 1) * K * K
    weight = jax.random.normal(k_w, (Cout, Cin + 1, K, K), dtype=jnp.float32) / np.sqrt(fan_in)
    bias = jax.random.normal(k_b, (Cout,), dtype=jnp.float32) * 0.01
    t = jnp.float32(0.5)

    out = jax.jit(concat_conv2d)(t, x, weight, bias)
    out = jax.block_until_ready(out)
    assert out.shape == (B, Cout, H - K + 1, W - K + 1)

    # Reference check with XLA's conv on the original (tt ++ x) formulation.
    tt = jnp.ones_like(x[:, :1, :, :]) * t
    ttx = jnp.concatenate([tt, x], axis=1)
    ref = jax.lax.conv_general_dilated(
        ttx, weight, window_strides=(1, 1), padding="VALID",
        dimension_numbers=("NCHW", "OIHW", "NCHW"),
    ) + bias[None, :, None, None]
    np.testing.assert_allclose(np.asarray(out), np.asarray(ref), rtol=1e-5, atol=1e-4)

    print("KERNEL_OK")
</pallas_src>

<mosaic_0001>
module attributes {stable_mosaic.version = 11 : i64} {
  func.func @kernel(%arg0: i32, %arg1: memref<1x4x384xf32, #tpu.memory_space<vmem>>, %arg2: memref<8x36xf32, #tpu.memory_space<vmem>>, %arg3: memref<8x1xf32, #tpu.memory_space<vmem>>, %arg4: memref<1x8x256xf32, #tpu.memory_space<vmem>>) attributes {dimension_semantics = [#tpu.dimension_semantics<parallel>], iteration_bounds = array<i64: 2>, scalar_prefetch = 0 : i64, scratch_operands = 0 : i64, tpu.core_type = #tpu.core_type<tc>, window_params = [{transform_indices = @transform_0, window_bounds = array<i64: 1, 4, 384>}, {pipeline_mode = #tpu.pipeline_mode<synchronous>, transform_indices = @transform_1, window_bounds = array<i64: 8, 36>}, {pipeline_mode = #tpu.pipeline_mode<synchronous>, transform_indices = @transform_2, window_bounds = array<i64: 8, 1>}, {transform_indices = @transform_3, window_bounds = array<i64: 1, 8, 256>}]} {
    %c0 = arith.constant 0 : index
    %c0_0 = arith.constant 0 : index
    %c0_1 = arith.constant 0 : index
    %0 = vector.load %arg1[%c0, %c0_0, %c0_1] : memref<1x4x384xf32, #tpu.memory_space<vmem>>, vector<1x4x384xf32>
    %1 = vector.extract_strided_slice %0 {offsets = [0, 0, 0], sizes = [1, 4, 256], strides = [1, 1, 1]} : vector<1x4x384xf32> to vector<1x4x256xf32>
    %2 = vector.shape_cast %1 : vector<1x4x256xf32> to vector<4x256xf32>
    %3 = vector.extract_strided_slice %0 {offsets = [0, 0, 1], sizes = [1, 4, 256], strides = [1, 1, 1]} : vector<1x4x384xf32> to vector<1x4x256xf32>
    %4 = vector.shape_cast %3 : vector<1x4x256xf32> to vector<4x256xf32>
    %5 = vector.extract_strided_slice %0 {offsets = [0, 0, 2], sizes = [1, 4, 256], strides = [1, 1, 1]} : vector<1x4x384xf32> to vector<1x4x256xf32>
    %6 = vector.shape_cast %5 : vector<1x4x256xf32> to vector<4x256xf32>
    %7 = vector.extract_strided_slice %0 {offsets = [0, 0, 16], sizes = [1, 4, 256], strides = [1, 1, 1]} : vector<1x4x384xf32> to vector<1x4x256xf32>
    %8 = vector.shape_cast %7 : vector<1x4x256xf32> to vector<4x256xf32>
    %9 = vector.extract_strided_slice %0 {offsets = [0, 0, 17], sizes = [1, 4, 256], strides = [1, 1, 1]} : vector<1x4x384xf32> to vector<1x4x256xf32>
    %10 = vector.shape_cast %9 : vector<1x4x256xf32> to vector<4x256xf32>
    %11 = vector.extract_strided_slice %0 {offsets = [0, 0, 18], sizes = [1, 4, 256], strides = [1, 1, 1]} : vector<1x4x384xf32> to vector<1x4x256xf32>
    %12 = vector.shape_cast %11 : vector<1x4x256xf32> to vector<4x256xf32>
    %13 = vector.extract_strided_slice %0 {offsets = [0, 0, 32], sizes = [1, 4, 256], strides = [1, 1, 1]} : vector<1x4x384xf32> to vector<1x4x256xf32>
    %14 = vector.shape_cast %13 : vector<1x4x256xf32> to vector<4x256xf32>
    %15 = vector.extract_strided_slice %0 {offsets = [0, 0, 33], sizes = [1, 4, 256], strides = [1, 1, 1]} : vector<1x4x384xf32> to vector<1x4x256xf32>
    %16 = vector.shape_cast %15 : vector<1x4x256xf32> to vector<4x256xf32>
    %17 = vector.extract_strided_slice %0 {offsets = [0, 0, 34], sizes = [1, 4, 256], strides = [1, 1, 1]} : vector<1x4x384xf32> to vector<1x4x256xf32>
    %18 = vector.shape_cast %17 : vector<1x4x256xf32> to vector<4x256xf32>
    %19 = tpu.concatenate %2, %4, %6, %8, %10, %12, %14, %16, %18 in 0 : vector<4x256xf32>, vector<4x256xf32>, vector<4x256xf32>, vector<4x256xf32>, vector<4x256xf32>, vector<4x256xf32>, vector<4x256xf32>, vector<4x256xf32>, vector<4x256xf32> -> vector<36x256xf32>
    %c0_2 = arith.constant 0 : index
    %c0_3 = arith.constant 0 : index
    %20 = vector.load %arg2[%c0_2, %c0_3] : memref<8x36xf32, #tpu.memory_space<vmem>>, vector<8x36xf32>
    %cst = arith.constant dense<0.000000e+00> : vector<8x256xf32>
    %21 = tpu.matmul %20, %19, %cst {dimension_numbers = #tpu.dot_dimension_numbers<[1], [0], [0], [1], [0, 0, 1, 1], [], []>} : vector<8x36xf32>, vector<36x256xf32>, vector<8x256xf32> -> vector<8x256xf32>
    %c0_4 = arith.constant 0 : index
    %c0_5 = arith.constant 0 : index
    %22 = vector.load %arg3[%c0_4, %c0_5] : memref<8x1xf32, #tpu.memory_space<vmem>>, vector<8x1xf32>
    %23 = vector.broadcast %22 : vector<8x1xf32> to vector<8x256xf32>
    %24 = arith.addf %21, %23 : vector<8x256xf32>
    %c0_6 = arith.constant 0 : index
    %c0_7 = arith.constant 0 : index
    %c0_8 = arith.constant 0 : index
    %25 = vector.load %arg4[%c0_6, %c0_7, %c0_8] : memref<1x8x256xf32, #tpu.memory_space<vmem>>, vector<1x8x256xf32>
    %26 = vector.shape_cast %25 : vector<1x8x256xf32> to vector<8x256xf32>
    %27 = vector.shape_cast %24 : vector<8x256xf32> to vector<1x8x256xf32>
    tpu.vector_store %arg4[%c0_6, %c0_7, %c0_8], %27 {strides = array<i32>} : memref<1x8x256xf32, #tpu.memory_space<vmem>>, vector<1x8x256xf32>,
    return
  }
  func.func @transform_0(%arg0: i32) -> (i32, i32, i32) {
    %c0_i32 = arith.constant 0 : i32
    %c0_i32_0 = arith.constant 0 : i32
    %c0_i32_1 = arith.constant 0 : i32
    return %arg0, %c0_i32, %c0_i32_0 : i32, i32, i32
  }
  func.func @transform_1(%arg0: i32) -> (i32, i32) {
    %c0_i32 = arith.constant 0 : i32
    %c0_i32_0 = arith.constant 0 : i32
    %c0_i32_1 = arith.constant 0 : i32
    return %c0_i32, %c0_i32_0 : i32, i32
  }
  func.func @transform_2(%arg0: i32) -> (i32, i32) {
    %c0_i32 = arith.constant 0 : i32
    %c0_i32_0 = arith.constant 0 : i32
    %c0_i32_1 = arith.constant 0 : i32
    return %c0_i32, %c0_i32_0 : i32, i32
  }
  func.func @transform_3(%arg0: i32) -> (i32, i32, i32) {
    %c0_i32 = arith.constant 0 : i32
    %c0_i32_0 = arith.constant 0 : i32
    %c0_i32_1 = arith.constant 0 : i32
    return %arg0, %c0_i32, %c0_i32_0 : i32, i32, i32
  }
}

</mosaic_0001>

<llo_original>
// kernel: concat_conv2d.1
$region0: #{concat_conv2d.1}
  #allocation0 [shape = 'u32[]', space=smem, size = 0x4, offset = 0x4, fixed_abs, tag = 'smem constant byte address 0x4 - core index']
  #allocation1 [shape = 'u32[144,128]{1,0:T(1,128)}', space=vmem, size = 0x12000, scoped, tag = 'internal scratch']
  %s0 = inlined_call_operand.vmem [shape: f32[2,4,384], index: 0, kind: input, shape index: {}]
  %s1 = inlined_call_operand.vmem [shape: f32[8,36], index: 1, kind: input, shape index: {}]
  %s2 = inlined_call_operand.vmem [shape: f32[8,1], index: 2, kind: input, shape index: {}]
  %s3 = inlined_call_operand.vmem [shape: f32[2,8,256], index: 3, kind: output, shape index: {}]
  %s4 = sld [smem:[#allocation0]]
  $region45: #{concat_conv2d.1} parent=0
    _
  %s6 = ssub.s32 1, %s4
  %s7 = scalar_select 0, %s6, %s4
  loop: start=0, step=1, limit=4
  $region2: #{concat_conv2d.1} parent=0 // loop_pre_header
    _
  $region3: #{concat_conv2d.1} parent=0 // loop_header
    %s9 = sphi 0, %s13
    %p10 = scmp.ge.s32.totalorder %s9, 4
    %s19 = sphi 0, %s21
    %s22 = sphi 0, %s19
    %s23 = sphi 0, %s22
    %s39 = sphi 0, %s23
    %s43 = sphi 0, %s43
    %s45 = sphi 0, %s43
    %s46 = sphi 0, %s45
    %s60 = sphi 0, %s46
    %s64 = sphi 0, %s64
    %s66 = sphi 0, %s64
    %s67 = sphi 0, %s66
    %s81 = sphi 0, %s67
    %s87 = sphi 0, %s89
    %s90 = sphi 0, %s87
    %s91 = sphi 0, %s90
    %s107 = sphi 0, %s91
  $region4: #{concat_conv2d.1} parent=0 // loop_header_branch
    %12 = sbr.rel (%p10) target = $region8
  $region5: #{concat_conv2d.1} parent=0 // loop_body
    %s14 = ssub.s32 %s9, 1
    %s15 = ssub.s32 %s9, 2
    %s16 = sadd.s32 %s9, 1
    %s17 = ssub.s32 %s9, %s16
    %p18 = scmp.eq.s32.totalorder %s17, 0
    %s20 = sadd.s32 %s19, 1
    %s21 = scalar_select %p18, %s19, %s20
    %p24 = pneg %p18
    %p25 = scmp.eq.s32.totalorder %s9, 1
    %p26 = por %p24, %p25
    %p27 = scmp.ne.s32.totalorder %s19, %s22
    %p28 = scmp.eq.s32.totalorder %s9, 0
    %p29 = por %p27, %p28
    %p30 = scmp.ne.s32.totalorder %s19, %s22
    %p31 = scmp.eq.s32.totalorder %s14, 1
    %p32 = por %p30, %p31
    %p33 = scmp.ne.s32.totalorder %s22, %s23
    %p34 = scmp.eq.s32.totalorder %s14, 0
    %p35 = por %p33, %p34
    %p36 = scmp.ne.s32.totalorder %s22, %s23
    %p37 = scmp.eq.s32.totalorder %s15, 1
    %p38 = por %p36, %p37
    %p40 = scmp.ne.s32.totalorder %s23, %s39
    %p41 = scmp.eq.s32.totalorder %s15, 0
    %p42 = por %p40, %p41
    %s44 = sadd.s32 %s43, 1
    %p47 = scmp.eq.s32.totalorder %s9, 1
    %p48 = scmp.ne.s32.totalorder %s43, %s45
    %p49 = scmp.eq.s32.totalorder %s9, 0
    %p50 = por %p48, %p49
    %p51 = scmp.ne.s32.totalorder %s43, %s45
    %p52 = scmp.eq.s32.totalorder %s14, 1
    %p53 = por %p51, %p52
    %p54 = scmp.ne.s32.totalorder %s45, %s46
    %p55 = scmp.eq.s32.totalorder %s14, 0
    %p56 = por %p54, %p55
    %p57 = scmp.ne.s32.totalorder %s45, %s46
    %p58 = scmp.eq.s32.totalorder %s15, 1
    %p59 = por %p57, %p58
    %p61 = scmp.ne.s32.totalorder %s46, %s60
    %p62 = scmp.eq.s32.totalorder %s15, 0
    %p63 = por %p61, %p62
    %s65 = sadd.s32 %s64, 1
    %p68 = scmp.eq.s32.totalorder %s9, 1
    %p69 = scmp.ne.s32.totalorder %s64, %s66
    %p70 = scmp.eq.s32.totalorder %s9, 0
    %p71 = por %p69, %p70
    %p72 = scmp.ne.s32.totalorder %s64, %s66
    %p73 = scmp.eq.s32.totalorder %s14, 1
    %p74 = por %p72, %p73
    %p75 = scmp.ne.s32.totalorder %s66, %s67
    %p76 = scmp.eq.s32.totalorder %s14, 0
    %p77 = por %p75, %p76
    %p78 = scmp.ne.s32.totalorder %s66, %s67
    %p79 = scmp.eq.s32.totalorder %s15, 1
    %p80 = por %p78, %p79
    %p82 = scmp.ne.s32.totalorder %s67, %s81
    %p83 = scmp.eq.s32.totalorder %s15, 0
    %p84 = por %p82, %p83
    %s85 = ssub.s32 %s9, %s16
    %p86 = scmp.eq.s32.totalorder %s85, 0
    %s88 = sadd.s32 %s87, 1
    %s89 = scalar_select %p86, %s87, %s88
    %p92 = pneg %p86
    %p93 = scmp.eq.s32.totalorder %s9, 1
    %p94 = por %p92, %p93
    %p95 = scmp.ne.s32.totalorder %s87, %s90
    %p96 = scmp.eq.s32.totalorder %s9, 0
    %p97 = por %p95, %p96
    %p98 = scmp.ne.s32.totalorder %s87, %s90
    %p99 = scmp.eq.s32.totalorder %s14, 1
    %p100 = por %p98, %p99
    %p101 = scmp.ne.s32.totalorder %s90, %s91
    %p102 = scmp.eq.s32.totalorder %s14, 0
    %p103 = por %p101, %p102
    %p104 = scmp.ne.s32.totalorder %s90, %s91
    %p105 = scmp.eq.s32.totalorder %s15, 1
    %p106 = por %p104, %p105
    %p108 = scmp.ne.s32.totalorder %s91, %s107
    %p109 = scmp.eq.s32.totalorder %s15, 0
    %p110 = por %p108, %p109
    %p111 = scmp.le.s32.totalorder 1, %s9
    %p112 = scmp.lt.s32.totalorder %s9, 3
    %p113 = pnand %p111, %p112
    %p114 = pneg %p113
    // Predicated region
    $region9: #{concat_conv2d.1} parent=5 // pred_check
      _
    $region10: #{concat_conv2d.1} parent=5 // pred_check_branch
      %116 = sbr.rel (%p113) target = $region12
    $region11: #{concat_conv2d.1} parent=5 // pred_region
      %s117 = ssub.s32 %s9, 1
      // Predicated region
      $region13: #{concat_conv2d.1} parent=11 // pred_check
        %p118 = pneg %p56
      $region14: #{concat_conv2d.1} parent=11 // pred_check_branch
        %120 = sbr.rel (%p118) target = $region16
      $region15: #{concat_conv2d.1} parent=11 // pred_region
        _
      $region16: #{concat_conv2d.1} parent=11 // pred_fallthru
        _
      // Predicated region
      $region17: #{concat_conv2d.1} parent=11 // pred_check
        %p121 = pneg %p77
      $region18: #{concat_conv2d.1} parent=11 // pred_check_branch
        %123 = sbr.rel (%p121) target = $region20
      $region19: #{concat_conv2d.1} parent=11 // pred_region
        _
      $region20: #{concat_conv2d.1} parent=11 // pred_fallthru
        _
    $region12: #{concat_conv2d.1} parent=5 // pred_fallthru
      _
    %p124 = scmp.lt.s32.totalorder %s9, 2
    // Predicated region
    $region21: #{concat_conv2d.1} parent=5 // pred_check
      %p125 = pneg %p124
    $region22: #{concat_conv2d.1} parent=5 // pred_check_branch
      %127 = sbr.rel (%p125) target = $region24
    $region23: #{concat_conv2d.1} parent=5 // pred_region
      // Predicated region
      $region25: #{concat_conv2d.1} parent=23 // pred_check
        %p128 = pneg %p29
      $region26: #{concat_conv2d.1} parent=23 // pred_check_branch
        %130 = sbr.rel (%p128) target = $region28
      $region27: #{concat_conv2d.1} parent=23 // pred_region
        %p131 = scmp.lt.s32.totalorder %s9, 1
        %s132 = scalar_select %p131, %s9, 1
        %s133 = smul.addr %s132, 3
        %s134 = smul.addr %s133, 4
        %s135 = scalar_lea.vmem %s0, %s134
      $region28: #{concat_conv2d.1} parent=23 // pred_fallthru
        _
    $region24: #{concat_conv2d.1} parent=5 // pred_fallthru
      _
    %p136 = scmp.le.s32.totalorder 1, %s9
    %p137 = scmp.lt.s32.totalorder %s9, 3
    %p138 = pnand %p136, %p137
    %p139 = pneg %p138
    // Predicated region
    $region29: #{concat_conv2d.1} parent=5 // pred_check
      _
    $region30: #{concat_conv2d.1} parent=5 // pred_check_branch
      %141 = sbr.rel (%p138) target = $region32
    $region31: #{concat_conv2d.1} parent=5 // pred_region
      %s142 = ssub.s32 %s9, 1
      %p143 = scmp.lt.s32.totalorder %s14, 1
      %s144 = scalar_select %p143, %s14, 1
      %s145 = smul.addr %s144, 3
      %s146 = smul.addr %s145, 4
      %s147 = scalar_lea.vmem %s0, %s146
      %p148 = pneg %p35
      %p149 = pneg %p32
      %p150 = pneg %p56
      %p151 = pneg %p53
      %p152 = pneg %p77
      %p153 = pneg %p74
      %p154 = pneg %p103
      %p155 = pneg %p100
      %p156 = scmp.lt.s32.totalorder %s14, 1
      %s157 = scalar_select %p156, %s14, 1
      %s158 = smul.addr %s157, 2
      %s159 = smul.addr %s158, 8
      %s160 = scalar_lea.vmem %s3, %s159
      %p161 = scmp.lt.s32.totalorder %s14, 1
      %s162 = scalar_select %p161, %s14, 1
      %s163 = smul.addr %s162, 3
      %s164 = smul.addr %s163, 4
      %s165 = scalar_lea.vmem %s0, %s164
      %p166 = scmp.lt.s32.totalorder %s14, 1
      %s167 = scalar_select %p166, %s14, 1
      %s168 = smul.addr %s167, 2
      %s169 = smul.addr %s168, 8
      %s170 = scalar_lea.vmem %s3, %s169
      %v171 = vld [vmem:[%s165] sm:$0xff]
      %v172 = vld [vmem:[%s165 + $0x8] sm:$0xf]
      %v174 = vcombine.high %v171, %v171
      %v177 = vcombine.low %v171, %v171
      %v178 = vcombine.low %v172, %v172
      %179 = vrot.lane.b32.xlu0 %v177, 127
      %v180 = vpop.permute.xlu0 %179
      %181 = vrot.lane.b32.xlu0 %v171, 127
      %v182 = vpop.permute.xlu0 %181
      %183 = vrot.lane.b32.xlu0 %v178, 127
      %v184 = vpop.permute.xlu0 %183
      %vm185 = vcmask 1039360
      %v186 = vsel %vm185, %v180, %v182
      %v187 = vsel %vm185, %v182, %v184
      %190 = vrot.lane.b32.xlu0 %v171, 126
      %v191 = vpop.permute.xlu0 %190
      %192 = vrot.lane.b32.xlu0 %v174, 126
      %v193 = vpop.permute.xlu0 %192
      %194 = vrot.lane.b32.xlu0 %v172, 126
      %v195 = vpop.permute.xlu0 %194
      %vm196 = vcmask 1031168
      %v197 = vsel %vm196, %v191, %v193
      %v198 = vsel %vm196, %v193, %v195
      %201 = vrot.lane.b32.xlu0 %v177, 112
      %v202 = vpop.permute.xlu0 %201
      %203 = vrot.lane.b32.xlu0 %v171, 112
      %v204 = vpop.permute.xlu0 %203
      %205 = vrot.lane.b32.xlu0 %v178, 112
      %v206 = vpop.permute.xlu0 %205
      %vm207 = vcmask 916480
      %v208 = vsel %vm207, %v202, %v204
      %v209 = vsel %vm207, %v204, %v206
      %212 = vrot.lane.b32.xlu0 %v171, 111
      %v213 = vpop.permute.xlu0 %212
      %214 = vrot.lane.b32.xlu0 %v174, 111
      %v215 = vpop.permute.xlu0 %214
      %216 = vrot.lane.b32.xlu0 %v172, 111
      %v217 = vpop.permute.xlu0 %216
      %vm218 = vcmask 908288
      %v219 = vsel %vm218, %v213, %v215
      %v220 = vsel %vm218, %v215, %v217
      %223 = vrot.lane.b32.xlu0 %v177, 110
      %v224 = vpop.permute.xlu0 %223
      %225 = vrot.lane.b32.xlu0 %v171, 110
      %v226 = vpop.permute.xlu0 %225
      %227 = vrot.lane.b32.xlu0 %v178, 110
      %v228 = vpop.permute.xlu0 %227
      %vm229 = vcmask 900096
      %v230 = vsel %vm229, %v224, %v226
      %v231 = vsel %vm229, %v226, %v228
      %234 = vrot.lane.b32.xlu0 %v171, 96
      %v235 = vpop.permute.xlu0 %234
      %236 = vrot.lane.b32.xlu0 %v174, 96
      %v237 = vpop.permute.xlu0 %236
      %238 = vrot.lane.b32.xlu0 %v172, 96
      %v239 = vpop.permute.xlu0 %238
      %vm240 = vcmask 785408
      %v241 = vsel %vm240, %v235, %v237
      %v242 = vsel %vm240, %v237, %v239
      %245 = vrot.lane.b32.xlu0 %v177, 95
      %v246 = vpop.permute.xlu0 %245
      %247 = vrot.lane.b32.xlu0 %v171, 95
      %v248 = vpop.permute.xlu0 %247
      %249 = vrot.lane.b32.xlu0 %v178, 95
      %v250 = vpop.permute.xlu0 %249
      %vm251 = vcmask 777216
      %v252 = vsel %vm251, %v246, %v248
      %v253 = vsel %vm251, %v248, %v250
      %256 = vrot.lane.b32.xlu0 %v171, 94
      %v257 = vpop.permute.xlu0 %256
      %258 = vrot.lane.b32.xlu0 %v174, 94
      %v259 = vpop.permute.xlu0 %258
      %260 = vrot.lane.b32.xlu0 %v172, 94
      %v261 = vpop.permute.xlu0 %260
      %vm262 = vcmask 769024
      %v263 = vsel %vm262, %v257, %v259
      %v264 = vsel %vm262, %v259, %v261
      %vm265 = vcmask 1043456
      %v266 = vsel %vm265, %v171, %v186
      %v267 = vsel %vm265, %v174, %v187
      %v268 = vsel %vm265, %v197, %v208
      %v269 = vsel %vm265, %v198, %v209
      %v270 = vsel %vm265, %v219, %v230
      %v271 = vsel %vm265, %v220, %v231
      %v272 = vsel %vm265, %v241, %v252
      %v273 = vsel %vm265, %v242, %v253
      %v274 = vld [vmem:[%s1] sm:$0xff]
      %v275 = vld [vmem:[%s2] sm:$0xff]
      %277 = vset.pattern.permute.xlu0 0
      %278 = vperm.xlu0 %277, %v275
      %v279 = vpop.permute.xlu0 %278
      %vm281 = vcmask 293888
      %v283 = vsel %vm281, %v274, 0
      %v285 = vsel %vm265, %v263, 0
      %v287 = vsel %vm265, %v264, 0
      %289 = vmatprep.subr.mxu0 0.0
      %290 = vmatpush1.msra.mxu0 0.0
      %291 = vmatprep.subr.mxu0 0.0
      %292 = vmatpush1.msra.mxu0 0.0
      %293 = vmatprep.subr.mxu0 0.0
      %294 = vmatpush1.msra.mxu0 0.0
      %295 = vmatprep.subr.mxu0 0.0
      %296 = vmatpush1.msra.mxu0 0.0
      %297 = vmatprep.subr.mxu0 0.0
      %298 = vmatpush1.msra.mxu0 0.0
      %299 = vmatprep.subr.mxu0 0.0
      %300 = vmatpush1.msra.mxu0 0.0
      %301 = vmatprep.subr.mxu0 0.0
      %302 = vmatpush1.msra.mxu0 0.0
      %303 = vmatprep.subr.mxu0 0.0
      %304 = vmatpush1.msra.mxu0 0.0
      %305 = vmatprep.subr.mxu0 0.0
      %306 = vmatpush1.msra.mxu0 0.0
      %307 = vmatprep.subr.mxu0 0.0
      %308 = vmatpush1.msra.mxu0 0.0
      %309 = vmatprep.subr.mxu0 0.0
      %310 = vmatpush1.msra.mxu0 0.0
      %311 = vmatprep.subr.mxu0 %v287
      %312 = vmatpush1.msra.mxu0 %v285
      %313 = vmatprep.subr.mxu0 %v273
      %314 = vmatpush1.msra.mxu0 %v272
      %315 = vmatprep.subr.mxu0 %v271
      %316 = vmatpush1.msra.mxu0 %v270
      %317 = vmatprep.subr.mxu0 %v269
      %318 = vmatpush1.msra.mxu0 %v268
      %319 = vmatprep.subr.mxu0 %v267
      %320 = vmatpush1.msra.mxu0 %v266
      %321 = vmatprep.subr.mxu0 0.0
      %322 = vmatpush2.msra.mxu0 0.0
      %323 = vmatprep.subr.mxu0 0.0
      %324 = vmatpush2.msra.mxu0 0.0
      %325 = vmatprep.subr.mxu0 0.0
      %326 = vmatpush2.msra.mxu0 0.0
      %327 = vmatprep.subr.mxu0 0.0
      %328 = vmatpush2.msra.mxu0 0.0
      %329 = vmatprep.subr.mxu0 0.0
      %330 = vmatpush2.msra.mxu0 0.0
      %331 = vmatprep.subr.mxu0 0.0
      %332 = vmatpush2.msra.mxu0 0.0
      %333 = vmatprep.subr.mxu0 0.0
      %334 = vmatpush2.msra.mxu0 0.0
      %335 = vmatprep.subr.mxu0 0.0
      %336 = vmatpush2.msra.mxu0 0.0
      %337 = vmatprep.subr.mxu0 0.0
      %338 = vmatpush2.msra.mxu0 0.0
      %339 = vmatprep.subr.mxu0 0.0
      %340 = vmatpush2.msra.mxu0 0.0
      %341 = vmatprep.subr.mxu0 0.0
      %342 = vmatpush2.msra.mxu0 0.0
      %343 = vmatprep.subr.mxu0 0.0
      %344 = vmatpush2.msra.mxu0 0.0
      %345 = vmatprep.subr.mxu0 0.0
      %346 = vmatpush2.msra.mxu0 0.0
      %347 = vmatprep.subr.mxu0 0.0
      %348 = vmatpush2.msra.mxu0 0.0
      %349 = vmatprep.subr.mxu0 0.0
      %350 = vmatpush2.msra.mxu0 0.0
      %351 = vmatprep.subr.mxu0 0.0
      %352 = vmatpush2.msra.mxu0 0.0
      %353 = vmatprep.mubr.f32.mxu0 0.0
      %354 = vmatmul.mubr.f32.gmra.mxu0 %v283
      %v355 = vpop.f32.mrf.mxu0
      %v356 = vadd.f32 %v279, %v355
      %v357 = vpop.f32.mrf.mxu0
      %v358 = vadd.f32 %v279, %v357
      %359 = vdwg.mxu0
      %360 = vst [vmem:[%s170] sm:$0xff] %v356
      %361 = vst [vmem:[%s170 + $0x8] sm:$0xff] %v358
      %p362 = scmp.lt.s32.totalorder %s14, 1
      %s363 = scalar_select %p362, %s14, 1
      %s364 = smul.addr %s363, 2
      %s365 = smul.addr %s364, 8
      %s366 = scalar_lea.vmem %s3, %s365
      // Predicated region
      $region33: #{concat_conv2d.1} parent=31 // pred_check
        %p367 = pneg %p100
      $region34: #{concat_conv2d.1} parent=31 // pred_check_branch
        %369 = sbr.rel (%p367) target = $region36
      $region35: #{concat_conv2d.1} parent=31 // pred_region
        _
      $region36: #{concat_conv2d.1} parent=31 // pred_fallthru
        _
    $region32: #{concat_conv2d.1} parent=5 // pred_fallthru
      _
    %p370 = scmp.le.s32.totalorder 2, %s9
    // Predicated region
    $region37: #{concat_conv2d.1} parent=5 // pred_check
      %p371 = pneg %p370
    $region38: #{concat_conv2d.1} parent=5 // pred_check_branch
      %373 = sbr.rel (%p371) target = $region40
    $region39: #{concat_conv2d.1} parent=5 // pred_region
      %s374 = ssub.s32 %s9, 2
      // Predicated region
      $region41: #{concat_conv2d.1} parent=39 // pred_check
        %p375 = pneg %p106
      $region42: #{concat_conv2d.1} parent=39 // pred_check_branch
        %377 = sbr.rel (%p375) target = $region44
      $region43: #{concat_conv2d.1} parent=39 // pred_region
        %p378 = scmp.lt.s32.totalorder %s15, 1
        %s379 = scalar_select %p378, %s15, 1
        %s380 = smul.addr %s379, 2
        %s381 = smul.addr %s380, 8
        %s382 = scalar_lea.vmem %s3, %s381
      $region44: #{concat_conv2d.1} parent=39 // pred_fallthru
        _
    $region40: #{concat_conv2d.1} parent=5 // pred_fallthru
      _
  $region6: #{concat_conv2d.1} parent=0 // loop_footer
    %s13 = sadd.s32 1, %s9
  $region7: #{concat_conv2d.1} parent=0 // loop_footer_branch
    %8 = sbr.rel target = $region3
  $region8: #{concat_conv2d.1} parent=0 // loop_exit
    _

</llo_original>
